<compile_context>
chip_gen: v5e
topology: v5e:2x2
jax: 0.10.0
libtpu: 0.0.40
codegen_flags: <defaults>
</compile_context>

<pallas_src>
import numpy as np
import jax
import jax.numpy as jnp
from jax.experimental import pallas as pl
from jax.experimental.pallas import tpu as pltpu

# ----------------------------- static sizes ---------------------------------
N_VOX   = 64      # padded number of voxels in the point cloud
C_PAD   = 8       # padded number of clusters
E_PAD   = 16      # padded number of edges
F_NODE  = 16      # geometric node-feature width (13 real + 3 pad)
F_EDGE  = 32      # geometric edge-feature width (19 real + 13 pad)
HID     = 32      # GNN hidden width (also prediction-head pad; real out = 2)
DIN_E   = 2 * F_NODE + F_EDGE   # 64 : merged edge-MLP input width
DIN_N   = F_NODE + HID          # 48 : merged node-MLP input width

# packed weight-slab layout (row offsets; every block is HID lanes wide and
# starts on a sublane-aligned (x8) row so in-kernel slices stay aligned)
OFF_WE1, OFF_BE1 = 0,   64
OFF_WE2, OFF_BE2 = 72,  104
OFF_WEO, OFF_BEO = 112, 144
OFF_WN1, OFF_BN1 = 152, 200
OFF_WN2, OFF_BN2 = 208, 240
OFF_WNO, OFF_BNO = 248, 280
SLAB_ROWS = 288


def _vmem():
    return pl.BlockSpec(memory_space=pltpu.MemorySpace.VMEM)


# ------------------- Pallas kernel: fused ClustFullGNN forward ----------------
def _fused_gnn_kernel(data_ref, onehot_ref, src_oh_ref, dst_oh_ref, adj_ref,
                      w_ref, node_out_ref, edge_out_ref):
    f32 = jnp.float32
    bf16 = jnp.bfloat16
    dotf = lambda a, b: jnp.dot(a, b, preferred_element_type=f32)
    dotb = lambda a, b: jnp.dot(a.astype(bf16), b.astype(bf16),
                                preferred_element_type=f32)

    # ---- per-cluster voxel aggregation: segment sums as a one-hot matmul ----
    data = data_ref[...]                                    # (N_VOX, 6)
    xyz = data[:, 0:3]
    val = data[:, 4:5]
    aug = jnp.concatenate([
        xyz, xyz * xyz,
        xyz[:, 0:1] * xyz[:, 1:2],
        xyz[:, 0:1] * xyz[:, 2:3],
        xyz[:, 1:2] * xyz[:, 2:3],
        val, jnp.ones((N_VOX, 1), f32)], axis=1)            # (N_VOX, 11)
    sums = dotf(onehot_ref[...], aug)                       # (C_PAD, 11), f32

    # ---- geometric node features (never leave vregs) ----
    cnt = jnp.maximum(sums[:, 10:11], 1.0)
    inv = 1.0 / cnt
    mean = sums[:, 0:3] * inv
    exx = sums[:, 3:6] * inv
    exy = sums[:, 6:9] * inv
    cov_diag = exx - mean * mean
    cov_off = exy - jnp.concatenate(
        [mean[:, 0:1] * mean[:, 1:2],
         mean[:, 0:1] * mean[:, 2:3],
         mean[:, 1:2] * mean[:, 2:3]], axis=1)
    sum_val = sums[:, 9:10]
    mean_val = sum_val * inv
    spread = jnp.sqrt(jnp.maximum(
        jnp.sum(cov_diag, axis=1, keepdims=True), 0.0))
    x = jnp.concatenate(
        [mean, cov_diag, cov_off, cnt, sum_val, mean_val, spread,
         jnp.zeros((C_PAD, F_NODE - 13), f32)], axis=1)     # (C_PAD, F_NODE)

    # ---- endpoint gathers as one-hot selection matmuls ----
    x_src = dotf(src_oh_ref[...], x)                        # (E_PAD, F_NODE)
    x_dst = dotf(dst_oh_ref[...], x)

    # ---- geometric edge features (centroids = first 3 node-feature lanes) ----
    c_s = x_src[:, 0:3]
    c_d = x_dst[:, 0:3]
    disp = c_d - c_s
    dist = jnp.sqrt(jnp.sum(disp * disp, axis=1, keepdims=True))
    outer = jnp.concatenate(
        [disp[:, 0:1] * disp, disp[:, 1:2] * disp, disp[:, 2:3] * disp], axis=1)
    e_feat = jnp.concatenate(
        [c_s, c_d, disp, dist, outer,
         jnp.zeros((E_PAD, F_EDGE - 19), f32)], axis=1)     # (E_PAD, F_EDGE)

    # ---- edge MLP: merged [x_src | x_dst | e] operand, packed weights ----
    he_in = jnp.concatenate([x_src, x_dst, e_feat], axis=1)   # (E_PAD, DIN_E)
    h_e = jnp.maximum(dotb(he_in, w_ref[OFF_WE1:OFF_WE1 + DIN_E, :])
                      + w_ref[OFF_BE1:OFF_BE1 + 1, :], 0.0)
    h_e = jnp.maximum(dotb(h_e, w_ref[OFF_WE2:OFF_WE2 + HID, :])
                      + w_ref[OFF_BE2:OFF_BE2 + 1, :], 0.0)
    edge_out_ref[...] = (dotb(h_e, w_ref[OFF_WEO:OFF_WEO + HID, :])
                         + w_ref[OFF_BEO:OFF_BEO + 1, :])

    # ---- scatter-add of edge messages to destination nodes as a matmul ----
    agg = dotf(adj_ref[...], h_e)                           # (C_PAD, HID)

    # ---- node MLP: merged [x | agg] operand ----
    hn_in = jnp.concatenate([x, agg], axis=1)               # (C_PAD, DIN_N)
    h_n = jnp.maximum(dotb(hn_in, w_ref[OFF_WN1:OFF_WN1 + DIN_N, :])
                      + w_ref[OFF_BN1:OFF_BN1 + 1, :], 0.0)
    h_n = jnp.maximum(dotb(h_n, w_ref[OFF_WN2:OFF_WN2 + HID, :])
                      + w_ref[OFF_BN2:OFF_BN2 + 1, :], 0.0)
    node_out_ref[...] = (dotb(h_n, w_ref[OFF_WNO:OFF_WNO + HID, :])
                         + w_ref[OFF_BNO:OFF_BNO + 1, :])


@jax.jit
def _device_forward(data, onehot, src_oh, dst_oh, adj, wslab):
    return pl.pallas_call(
        _fused_gnn_kernel,
        out_shape=(jax.ShapeDtypeStruct((C_PAD, HID), jnp.float32),
                   jax.ShapeDtypeStruct((E_PAD, HID), jnp.float32)),
        in_specs=[_vmem() for _ in range(6)],
        out_specs=(_vmem(), _vmem()),
    )(data.astype(jnp.float32), onehot, src_oh, dst_oh, adj, wslab)


# ---------------------------- parameter init ---------------------------------
def init_params(key):
    """Returns the single packed (SLAB_ROWS, HID) f32 weight slab."""
    ks = jax.random.split(key, 6)
    s = 0.1
    n = lambda k, shp: jax.random.normal(k, shp, jnp.float32) * s
    slab = jnp.zeros((SLAB_ROWS, HID), jnp.float32)
    slab = slab.at[OFF_WE1:OFF_WE1 + DIN_E].set(n(ks[0], (DIN_E, HID)))
    slab = slab.at[OFF_WE2:OFF_WE2 + HID].set(n(ks[1], (HID, HID)))
    slab = slab.at[OFF_WEO:OFF_WEO + HID].set(n(ks[2], (HID, HID)))
    slab = slab.at[OFF_WN1:OFF_WN1 + DIN_N].set(n(ks[3], (DIN_N, HID)))
    slab = slab.at[OFF_WN2:OFF_WN2 + HID].set(n(ks[4], (HID, HID)))
    slab = slab.at[OFF_WNO:OFF_WNO + HID].set(n(ks[5], (HID, HID)))
    # bias rows stay zero
    return jax.device_put(slab)


# -------------------------- host-side graph glue ------------------------------
# TODO(synk): DBSCAN / delaunay / mst graph construction are host algorithms
# with no clean Pallas equivalent; only the default 'complete' network is done.
def form_clusters_np(data, node_min_size=-1):
    clusts = []
    for b in np.unique(data[:, 3]):
        bmask = np.where(data[:, 3] == b)[0]
        for c in np.unique(data[bmask, -1]):
            idx = bmask[data[bmask, -1] == c]
            if node_min_size < 0 or len(idx) >= node_min_size:
                clusts.append(idx)
    return clusts


def get_cluster_batch_np(data, clusts):
    return np.array([int(data[c[0], 3]) for c in clusts], dtype=np.int64)


def complete_graph_np(batch_ids):
    edges = []
    for b in np.unique(batch_ids):
        ids = np.where(batch_ids == b)[0]
        if len(ids) < 2:
            continue
        i, j = np.triu_indices(len(ids), k=1)
        edges.append(np.stack([ids[i], ids[j]], axis=0))
    if not edges:
        return np.empty((2, 0), dtype=np.int64)
    return np.concatenate(edges, axis=1).astype(np.int64)


# ------------------------ ClustFullGNN forward --------------------------------
def clust_full_gnn_forward(data_list, wslab, node_min_size=-1):
    data = data_list[0]
    data_np = np.asarray(data)
    result = {}
    clusts = form_clusters_np(data_np, node_min_size)
    if not len(clusts):
        return result
    batch_ids = get_cluster_batch_np(data_np, clusts)
    if len(clusts) == 1:
        edge_index = np.empty((2, 0), dtype=np.int64)
    else:
        edge_index = complete_graph_np(batch_ids)
    if not edge_index.shape[1]:
        return result

    N, C, E = data_np.shape[0], len(clusts), edge_index.shape[1]
    assert N <= N_VOX and C <= C_PAD and E <= E_PAD, \
        "static pads exceeded (N_VOX / C_PAD / E_PAD)"

    # sparse incidence operators (vectorized numpy scatters, no per-edge loops)
    onehot = np.zeros((C_PAD, N_VOX), np.float32)
    for ci, c in enumerate(clusts):
        onehot[ci, c] = 1.0
    er = np.arange(E)
    src_oh = np.zeros((E_PAD, C_PAD), np.float32)
    dst_oh = np.zeros((E_PAD, C_PAD), np.float32)
    adj = np.zeros((C_PAD, E_PAD), np.float32)
    src_oh[er, edge_index[0]] = 1.0
    dst_oh[er, edge_index[1]] = 1.0
    adj[edge_index[1], er] = 1.0

    data_pad = np.zeros((N_VOX, data_np.shape[1]), np.float32)
    data_pad[:N] = data_np

    # single fused kernel dispatch
    node_out, edge_out = _device_forward(
        jnp.asarray(data_pad), jnp.asarray(onehot), jnp.asarray(src_oh),
        jnp.asarray(dst_oh), jnp.asarray(adj), wslab)
    node_out, edge_out = jax.block_until_ready((node_out, edge_out))
    node_pred = np.asarray(node_out)[:C, :2]
    edge_pred = np.asarray(edge_out)[:E, :2]

    # host-side per-batch re-indexing (mirrors the module's numpy postprocessing)
    _, counts = np.unique(data_np[:, 3], return_counts=True)
    vids = np.concatenate([np.arange(n) for n in counts])
    cids = np.concatenate([np.arange(n)
                           for n in np.unique(batch_ids, return_counts=True)[1]])
    bcids = [np.where(batch_ids == b)[0] for b in range(len(counts))]
    beids = [np.where(batch_ids[edge_index[0]] == b)[0] for b in range(len(counts))]
    node_pred_l = [node_pred[b] for b in bcids]
    edge_pred_l = [edge_pred[b] for b in beids]
    edge_index_l = [cids[edge_index[:, b]].T for b in beids]
    clusts_arr = np.empty(len(clusts), dtype=object)
    for i, c in enumerate(clusts):
        clusts_arr[i] = c
    clusts_l = [np.array([vids[c] for c in clusts_arr[b]], dtype=object)
                for b in bcids]
    return {'node_pred': [node_pred_l], 'edge_pred': [edge_pred_l],
            'edge_index': [edge_index_l], 'clusts': [clusts_l]}


# --------------------------------- main ---------------------------------------
if __name__ == "__main__":
    key = jax.random.PRNGKey(0)
    kparam, kdata = jax.random.split(key)
    wslab = init_params(kparam)

    # synthetic (N,6) point cloud: [x, y, z, batch_id, value, cluster_id]
    # sorted by batch (batch 0: 3 clusters, batch 1: 4 clusters)
    b = np.concatenate([np.zeros(32), np.ones(32)]).astype(np.float32)
    cid = np.concatenate([np.repeat([0, 1, 2], [12, 10, 10]),
                          np.repeat([0, 1, 2, 3], [8, 8, 8, 8])]).astype(np.float32)
    k1, k2, k3 = jax.random.split(kdata, 3)
    centers = np.asarray(jax.random.normal(k1, (2, 4, 3), jnp.float32)) * 5.0
    noise = np.asarray(jax.random.normal(k2, (N_VOX, 3), jnp.float32)) * 0.5
    coords = centers[b.astype(int), cid.astype(int)] + noise
    vals = np.asarray(jax.random.uniform(k3, (N_VOX, 1), jnp.float32))
    data = np.concatenate([coords, b[:, None], vals, cid[:, None]],
                          axis=1).astype(np.float32)

    out = clust_full_gnn_forward([jnp.asarray(data)], wslab)
    assert 'node_pred' in out and 'edge_pred' in out
    assert out['node_pred'][0][0].shape[1] == 2
    assert out['edge_pred'][0][1].shape[1] == 2
    print("KERNEL_OK")
</pallas_src>

<mosaic_0001>
module attributes {stable_mosaic.version = 11 : i64} {
  func.func @_fused_gnn_kernel(%arg0: memref<64x6xf32, #tpu.memory_space<vmem>>, %arg1: memref<8x64xf32, #tpu.memory_space<vmem>>, %arg2: memref<16x8xf32, #tpu.memory_space<vmem>>, %arg3: memref<16x8xf32, #tpu.memory_space<vmem>>, %arg4: memref<8x16xf32, #tpu.memory_space<vmem>>, %arg5: memref<288x32xf32, #tpu.memory_space<vmem>>, %arg6: memref<8x32xf32, #tpu.memory_space<vmem>>, %arg7: memref<16x32xf32, #tpu.memory_space<vmem>>) attributes {dimension_semantics = [], scalar_prefetch = 0 : i64, scratch_operands = 0 : i64, tpu.core_type = #tpu.core_type<tc>} {
    %c0 = arith.constant 0 : index
    %c0_0 = arith.constant 0 : index
    %0 = vector.load %arg0[%c0, %c0_0] : memref<64x6xf32, #tpu.memory_space<vmem>>, vector<64x6xf32>
    %1 = vector.extract_strided_slice %0 {offsets = [0, 0], sizes = [64, 3], strides = [1, 1]} : vector<64x6xf32> to vector<64x3xf32>
    %2 = vector.extract_strided_slice %0 {offsets = [0, 4], sizes = [64, 1], strides = [1, 1]} : vector<64x6xf32> to vector<64x1xf32>
    %3 = arith.mulf %1, %1 : vector<64x3xf32>
    %4 = vector.extract_strided_slice %1 {offsets = [0, 0], sizes = [64, 1], strides = [1, 1]} : vector<64x3xf32> to vector<64x1xf32>
    %5 = vector.extract_strided_slice %1 {offsets = [0, 1], sizes = [64, 1], strides = [1, 1]} : vector<64x3xf32> to vector<64x1xf32>
    %6 = arith.mulf %4, %5 : vector<64x1xf32>
    %7 = vector.extract_strided_slice %1 {offsets = [0, 0], sizes = [64, 1], strides = [1, 1]} : vector<64x3xf32> to vector<64x1xf32>
    %8 = vector.extract_strided_slice %1 {offsets = [0, 2], sizes = [64, 1], strides = [1, 1]} : vector<64x3xf32> to vector<64x1xf32>
    %9 = arith.mulf %7, %8 : vector<64x1xf32>
    %10 = vector.extract_strided_slice %1 {offsets = [0, 1], sizes = [64, 1], strides = [1, 1]} : vector<64x3xf32> to vector<64x1xf32>
    %11 = vector.extract_strided_slice %1 {offsets = [0, 2], sizes = [64, 1], strides = [1, 1]} : vector<64x3xf32> to vector<64x1xf32>
    %12 = arith.mulf %10, %11 : vector<64x1xf32>
    %cst = arith.constant 1.000000e+00 : f32
    %13 = vector.broadcast %cst : f32 to vector<64x1xf32>
    %14 = tpu.concatenate %1, %3, %6, %9, %12, %2, %13 in 1 : vector<64x3xf32>, vector<64x3xf32>, vector<64x1xf32>, vector<64x1xf32>, vector<64x1xf32>, vector<64x1xf32>, vector<64x1xf32> -> vector<64x11xf32>
    %c0_1 = arith.constant 0 : index
    %c0_2 = arith.constant 0 : index
    %15 = vector.load %arg1[%c0_1, %c0_2] : memref<8x64xf32, #tpu.memory_space<vmem>>, vector<8x64xf32>
    %cst_3 = arith.constant dense<0.000000e+00> : vector<8x11xf32>
    %16 = tpu.matmul %15, %14, %cst_3 {dimension_numbers = #tpu.dot_dimension_numbers<[1], [0], [0], [1], [0, 0, 1, 1], [], []>} : vector<8x64xf32>, vector<64x11xf32>, vector<8x11xf32> -> vector<8x11xf32>
    %17 = vector.extract_strided_slice %16 {offsets = [0, 10], sizes = [8, 1], strides = [1, 1]} : vector<8x11xf32> to vector<8x1xf32>
    %cst_4 = arith.constant 1.000000e+00 : f32
    %18 = vector.broadcast %cst_4 : f32 to vector<8x1xf32>
    %19 = arith.maximumf %17, %18 : vector<8x1xf32>
    %cst_5 = arith.constant 1.000000e+00 : f32
    %20 = vector.broadcast %cst_5 : f32 to vector<8x1xf32>
    %21 = arith.divf %20, %19 : vector<8x1xf32>
    %22 = vector.extract_strided_slice %16 {offsets = [0, 0], sizes = [8, 3], strides = [1, 1]} : vector<8x11xf32> to vector<8x3xf32>
    %23 = vector.broadcast %21 : vector<8x1xf32> to vector<8x3xf32>
    %24 = arith.mulf %22, %23 : vector<8x3xf32>
    %25 = vector.extract_strided_slice %16 {offsets = [0, 3], sizes = [8, 3], strides = [1, 1]} : vector<8x11xf32> to vector<8x3xf32>
    %26 = vector.broadcast %21 : vector<8x1xf32> to vector<8x3xf32>
    %27 = arith.mulf %25, %26 : vector<8x3xf32>
    %28 = vector.extract_strided_slice %16 {offsets = [0, 6], sizes = [8, 3], strides = [1, 1]} : vector<8x11xf32> to vector<8x3xf32>
    %29 = vector.broadcast %21 : vector<8x1xf32> to vector<8x3xf32>
    %30 = arith.mulf %28, %29 : vector<8x3xf32>
    %31 = arith.mulf %24, %24 : vector<8x3xf32>
    %32 = arith.subf %27, %31 : vector<8x3xf32>
    %33 = vector.extract_strided_slice %24 {offsets = [0, 0], sizes = [8, 1], strides = [1, 1]} : vector<8x3xf32> to vector<8x1xf32>
    %34 = vector.extract_strided_slice %24 {offsets = [0, 1], sizes = [8, 1], strides = [1, 1]} : vector<8x3xf32> to vector<8x1xf32>
    %35 = arith.mulf %33, %34 : vector<8x1xf32>
    %36 = vector.extract_strided_slice %24 {offsets = [0, 0], sizes = [8, 1], strides = [1, 1]} : vector<8x3xf32> to vector<8x1xf32>
    %37 = vector.extract_strided_slice %24 {offsets = [0, 2], sizes = [8, 1], strides = [1, 1]} : vector<8x3xf32> to vector<8x1xf32>
    %38 = arith.mulf %36, %37 : vector<8x1xf32>
    %39 = vector.extract_strided_slice %24 {offsets = [0, 1], sizes = [8, 1], strides = [1, 1]} : vector<8x3xf32> to vector<8x1xf32>
    %40 = vector.extract_strided_slice %24 {offsets = [0, 2], sizes = [8, 1], strides = [1, 1]} : vector<8x3xf32> to vector<8x1xf32>
    %41 = arith.mulf %39, %40 : vector<8x1xf32>
    %42 = tpu.concatenate %35, %38, %41 in 1 : vector<8x1xf32>, vector<8x1xf32>, vector<8x1xf32> -> vector<8x3xf32>
    %43 = arith.subf %30, %42 : vector<8x3xf32>
    %44 = vector.extract_strided_slice %16 {offsets = [0, 9], sizes = [8, 1], strides = [1, 1]} : vector<8x11xf32> to vector<8x1xf32>
    %45 = arith.mulf %44, %21 : vector<8x1xf32>
    %cst_6 = arith.constant dense<0.000000e+00> : vector<8xf32>
    %46 = vector.multi_reduction <add>, %32, %cst_6 [1] : vector<8x3xf32> to vector<8xf32>
    %47 = vector.shape_cast %46 : vector<8xf32> to vector<8x1xf32>
    %cst_7 = arith.constant 0.000000e+00 : f32
    %48 = vector.broadcast %cst_7 : f32 to vector<8x1xf32>
    %49 = arith.maximumf %47, %48 : vector<8x1xf32>
    %50 = math.sqrt %49 : vector<8x1xf32>
    %cst_8 = arith.constant 0.000000e+00 : f32
    %51 = vector.broadcast %cst_8 : f32 to vector<8x3xf32>
    %52 = tpu.concatenate %24, %32, %43, %19, %44, %45, %50, %51 in 1 : vector<8x3xf32>, vector<8x3xf32>, vector<8x3xf32>, vector<8x1xf32>, vector<8x1xf32>, vector<8x1xf32>, vector<8x1xf32>, vector<8x3xf32> -> vector<8x16xf32>
    %c0_9 = arith.constant 0 : index
    %c0_10 = arith.constant 0 : index
    %53 = vector.load %arg2[%c0_9, %c0_10] : memref<16x8xf32, #tpu.memory_space<vmem>>, vector<16x8xf32>
    %cst_11 = arith.constant dense<0.000000e+00> : vector<16x16xf32>
    %54 = tpu.matmul %53, %52, %cst_11 {dimension_numbers = #tpu.dot_dimension_numbers<[1], [0], [0], [1], [0, 0, 1, 1], [], []>} : vector<16x8xf32>, vector<8x16xf32>, vector<16x16xf32> -> vector<16x16xf32>
    %c0_12 = arith.constant 0 : index
    %c0_13 = arith.constant 0 : index
    %55 = vector.load %arg3[%c0_12, %c0_13] : memref<16x8xf32, #tpu.memory_space<vmem>>, vector<16x8xf32>
    %cst_14 = arith.constant dense<0.000000e+00> : vector<16x16xf32>
    %56 = tpu.matmul %55, %52, %cst_14 {dimension_numbers = #tpu.dot_dimension_numbers<[1], [0], [0], [1], [0, 0, 1, 1], [], []>} : vector<16x8xf32>, vector<8x16xf32>, vector<16x16xf32> -> vector<16x16xf32>
    %57 = vector.extract_strided_slice %54 {offsets = [0, 0], sizes = [16, 3], strides = [1, 1]} : vector<16x16xf32> to vector<16x3xf32>
    %58 = vector.extract_strided_slice %56 {offsets = [0, 0], sizes = [16, 3], strides = [1, 1]} : vector<16x16xf32> to vector<16x3xf32>
    %59 = arith.subf %58, %57 : vector<16x3xf32>
    %60 = arith.mulf %59, %59 : vector<16x3xf32>
    %cst_15 = arith.constant dense<0.000000e+00> : vector<16xf32>
    %61 = vector.multi_reduction <add>, %60, %cst_15 [1] : vector<16x3xf32> to vector<16xf32>
    %62 = vector.shape_cast %61 : vector<16xf32> to vector<16x1xf32>
    %63 = math.sqrt %62 : vector<16x1xf32>
    %64 = vector.extract_strided_slice %59 {offsets = [0, 0], sizes = [16, 1], strides = [1, 1]} : vector<16x3xf32> to vector<16x1xf32>
    %65 = vector.broadcast %64 : vector<16x1xf32> to vector<16x3xf32>
    %66 = arith.mulf %65, %59 : vector<16x3xf32>
    %67 = vector.extract_strided_slice %59 {offsets = [0, 1], sizes = [16, 1], strides = [1, 1]} : vector<16x3xf32> to vector<16x1xf32>
    %68 = vector.broadcast %67 : vector<16x1xf32> to vector<16x3xf32>
    %69 = arith.mulf %68, %59 : vector<16x3xf32>
    %70 = vector.extract_strided_slice %59 {offsets = [0, 2], sizes = [16, 1], strides = [1, 1]} : vector<16x3xf32> to vector<16x1xf32>
    %71 = vector.broadcast %70 : vector<16x1xf32> to vector<16x3xf32>
    %72 = arith.mulf %71, %59 : vector<16x3xf32>
    %73 = tpu.concatenate %66, %69, %72 in 1 : vector<16x3xf32>, vector<16x3xf32>, vector<16x3xf32> -> vector<16x9xf32>
    %cst_16 = arith.constant 0.000000e+00 : f32
    %74 = vector.broadcast %cst_16 : f32 to vector<16x13xf32>
    %75 = tpu.concatenate %57, %58, %59, %63, %73, %74 in 1 : vector<16x3xf32>, vector<16x3xf32>, vector<16x3xf32>, vector<16x1xf32>, vector<16x9xf32>, vector<16x13xf32> -> vector<16x32xf32>
    %76 = tpu.concatenate %54, %56, %75 in 1 : vector<16x16xf32>, vector<16x16xf32>, vector<16x32xf32> -> vector<16x64xf32>
    %c0_17 = arith.constant 0 : index
    %c0_18 = arith.constant 0 : index
    %77 = vector.load %arg5[%c0_17, %c0_18] : memref<288x32xf32, #tpu.memory_space<vmem>>, vector<64x32xf32>
    %78 = arith.truncf %76 : vector<16x64xf32> to vector<16x64xbf16>
    %79 = arith.truncf %77 : vector<64x32xf32> to vector<64x32xbf16>
    %cst_19 = arith.constant dense<0.000000e+00> : vector<16x32xf32>
    %80 = tpu.matmul %78, %79, %cst_19 {dimension_numbers = #tpu.dot_dimension_numbers<[1], [0], [0], [1], [0, 0, 1, 1], [], []>} : vector<16x64xbf16>, vector<64x32xbf16>, vector<16x32xf32> -> vector<16x32xf32>
    %c64 = arith.constant 64 : index
    %c0_20 = arith.constant 0 : index
    %81 = vector.load %arg5[%c64, %c0_20] : memref<288x32xf32, #tpu.memory_space<vmem>>, vector<1x32xf32>
    %82 = vector.broadcast %81 : vector<1x32xf32> to vector<16x32xf32>
    %83 = arith.addf %80, %82 : vector<16x32xf32>
    %cst_21 = arith.constant 0.000000e+00 : f32
    %84 = vector.broadcast %cst_21 : f32 to vector<16x32xf32>
    %85 = arith.maximumf %83, %84 : vector<16x32xf32>
    %c72 = arith.constant 72 : index
    %c0_22 = arith.constant 0 : index
    %86 = vector.load %arg5[%c72, %c0_22] : memref<288x32xf32, #tpu.memory_space<vmem>>, vector<32x32xf32>
    %87 = arith.truncf %85 : vector<16x32xf32> to vector<16x32xbf16>
    %88 = arith.truncf %86 : vector<32x32xf32> to vector<32x32xbf16>
    %cst_23 = arith.constant dense<0.000000e+00> : vector<16x32xf32>
    %89 = tpu.matmul %87, %88, %cst_23 {dimension_numbers = #tpu.dot_dimension_numbers<[1], [0], [0], [1], [0, 0, 1, 1], [], []>} : vector<16x32xbf16>, vector<32x32xbf16>, vector<16x32xf32> -> vector<16x32xf32>
    %c104 = arith.constant 104 : index
    %c0_24 = arith.constant 0 : index
    %90 = vector.load %arg5[%c104, %c0_24] : memref<288x32xf32, #tpu.memory_space<vmem>>, vector<1x32xf32>
    %91 = vector.broadcast %90 : vector<1x32xf32> to vector<16x32xf32>
    %92 = arith.addf %89, %91 : vector<16x32xf32>
    %cst_25 = arith.constant 0.000000e+00 : f32
    %93 = vector.broadcast %cst_25 : f32 to vector<16x32xf32>
    %94 = arith.maximumf %92, %93 : vector<16x32xf32>
    %c112 = arith.constant 112 : index
    %c0_26 = arith.constant 0 : index
    %95 = vector.load %arg5[%c112, %c0_26] : memref<288x32xf32, #tpu.memory_space<vmem>>, vector<32x32xf32>
    %96 = arith.truncf %94 : vector<16x32xf32> to vector<16x32xbf16>
    %97 = arith.truncf %95 : vector<32x32xf32> to vector<32x32xbf16>
    %cst_27 = arith.constant dense<0.000000e+00> : vector<16x32xf32>
    %98 = tpu.matmul %96, %97, %cst_27 {dimension_numbers = #tpu.dot_dimension_numbers<[1], [0], [0], [1], [0, 0, 1, 1], [], []>} : vector<16x32xbf16>, vector<32x32xbf16>, vector<16x32xf32> -> vector<16x32xf32>
    %c144 = arith.constant 144 : index
    %c0_28 = arith.constant 0 : index
    %99 = vector.load %arg5[%c144, %c0_28] : memref<288x32xf32, #tpu.memory_space<vmem>>, vector<1x32xf32>
    %100 = vector.broadcast %99 : vector<1x32xf32> to vector<16x32xf32>
    %101 = arith.addf %98, %100 : vector<16x32xf32>
    %c0_29 = arith.constant 0 : index
    %c0_30 = arith.constant 0 : index
    %102 = vector.load %arg7[%c0_29, %c0_30] : memref<16x32xf32, #tpu.memory_space<vmem>>, vector<16x32xf32>
    tpu.vector_store %arg7[%c0_29, %c0_30], %101 {strides = array<i32>} : memref<16x32xf32, #tpu.memory_space<vmem>>, vector<16x32xf32>,
    %c0_31 = arith.constant 0 : index
    %c0_32 = arith.constant 0 : index
    %103 = vector.load %arg4[%c0_31, %c0_32] : memref<8x16xf32, #tpu.memory_space<vmem>>, vector<8x16xf32>
    %cst_33 = arith.constant dense<0.000000e+00> : vector<8x32xf32>
    %104 = tpu.matmul %103, %94, %cst_33 {dimension_numbers = #tpu.dot_dimension_numbers<[1], [0], [0], [1], [0, 0, 1, 1], [], []>} : vector<8x16xf32>, vector<16x32xf32>, vector<8x32xf32> -> vector<8x32xf32>
    %105 = tpu.concatenate %52, %104 in 1 : vector<8x16xf32>, vector<8x32xf32> -> vector<8x48xf32>
    %c152 = arith.constant 152 : index
    %c0_34 = arith.constant 0 : index
    %106 = vector.load %arg5[%c152, %c0_34] : memref<288x32xf32, #tpu.memory_space<vmem>>, vector<48x32xf32>
    %107 = arith.truncf %105 : vector<8x48xf32> to vector<8x48xbf16>
    %108 = arith.truncf %106 : vector<48x32xf32> to vector<48x32xbf16>
    %cst_35 = arith.constant dense<0.000000e+00> : vector<8x32xf32>
    %109 = tpu.matmul %107, %108, %cst_35 {dimension_numbers = #tpu.dot_dimension_numbers<[1], [0], [0], [1], [0, 0, 1, 1], [], []>} : vector<8x48xbf16>, vector<48x32xbf16>, vector<8x32xf32> -> vector<8x32xf32>
    %c200 = arith.constant 200 : index
    %c0_36 = arith.constant 0 : index
    %110 = vector.load %arg5[%c200, %c0_36] : memref<288x32xf32, #tpu.memory_space<vmem>>, vector<1x32xf32>
    %111 = vector.broadcast %110 : vector<1x32xf32> to vector<8x32xf32>
    %112 = arith.addf %109, %111 : vector<8x32xf32>
    %cst_37 = arith.constant 0.000000e+00 : f32
    %113 = vector.broadcast %cst_37 : f32 to vector<8x32xf32>
    %114 = arith.maximumf %112, %113 : vector<8x32xf32>
    %c208 = arith.constant 208 : index
    %c0_38 = arith.constant 0 : index
    %115 = vector.load %arg5[%c208, %c0_38] : memref<288x32xf32, #tpu.memory_space<vmem>>, vector<32x32xf32>
    %116 = arith.truncf %114 : vector<8x32xf32> to vector<8x32xbf16>
    %117 = arith.truncf %115 : vector<32x32xf32> to vector<32x32xbf16>
    %cst_39 = arith.constant dense<0.000000e+00> : vector<8x32xf32>
    %118 = tpu.matmul %116, %117, %cst_39 {dimension_numbers = #tpu.dot_dimension_numbers<[1], [0], [0], [1], [0, 0, 1, 1], [], []>} : vector<8x32xbf16>, vector<32x32xbf16>, vector<8x32xf32> -> vector<8x32xf32>
    %c240 = arith.constant 240 : index
    %c0_40 = arith.constant 0 : index
    %119 = vector.load %arg5[%c240, %c0_40] : memref<288x32xf32, #tpu.memory_space<vmem>>, vector<1x32xf32>
    %120 = vector.broadcast %119 : vector<1x32xf32> to vector<8x32xf32>
    %121 = arith.addf %118, %120 : vector<8x32xf32>
    %cst_41 = arith.constant 0.000000e+00 : f32
    %122 = vector.broadcast %cst_41 : f32 to vector<8x32xf32>
    %123 = arith.maximumf %121, %122 : vector<8x32xf32>
    %c248 = arith.constant 248 : index
    %c0_42 = arith.constant 0 : index
    %124 = vector.load %arg5[%c248, %c0_42] : memref<288x32xf32, #tpu.memory_space<vmem>>, vector<32x32xf32>
    %125 = arith.truncf %123 : vector<8x32xf32> to vector<8x32xbf16>
    %126 = arith.truncf %124 : vector<32x32xf32> to vector<32x32xbf16>
    %cst_43 = arith.constant dense<0.000000e+00> : vector<8x32xf32>
    %127 = tpu.matmul %125, %126, %cst_43 {dimension_numbers = #tpu.dot_dimension_numbers<[1], [0], [0], [1], [0, 0, 1, 1], [], []>} : vector<8x32xbf16>, vector<32x32xbf16>, vector<8x32xf32> -> vector<8x32xf32>
    %c280 = arith.constant 280 : index
    %c0_44 = arith.constant 0 : index
    %128 = vector.load %arg5[%c280, %c0_44] : memref<288x32xf32, #tpu.memory_space<vmem>>, vector<1x32xf32>
    %129 = vector.broadcast %128 : vector<1x32xf32> to vector<8x32xf32>
    %130 = arith.addf %127, %129 : vector<8x32xf32>
    %c0_45 = arith.constant 0 : index
    %c0_46 = arith.constant 0 : index
    %131 = vector.load %arg6[%c0_45, %c0_46] : memref<8x32xf32, #tpu.memory_space<vmem>>, vector<8x32xf32>
    tpu.vector_store %arg6[%c0_45, %c0_46], %130 {strides = array<i32>} : memref<8x32xf32, #tpu.memory_space<vmem>>, vector<8x32xf32>,
    return
  }
}

</mosaic_0001>

<llo_original>
// kernel: _device_forward.1
$region0: #{_device_forward.1}
  #allocation0 [shape = 'u32[]', space=smem, size = 0x4, offset = 0x4, fixed_abs, tag = 'smem constant byte address 0x4 - core index']
  #allocation1 [shape = 'u32[72,128]{1,0:T(1,128)}', space=vmem, size = 0x9000, scoped, tag = 'internal scratch']
  %s0 = inlined_call_operand.vmem [shape: f32[64,6], index: 0, kind: input, shape index: {}]
  %s1 = inlined_call_operand.vmem [shape: f32[8,64], index: 1, kind: input, shape index: {}]
  %s2 = inlined_call_operand.vmem [shape: f32[16,8], index: 2, kind: input, shape index: {}]
  %s3 = inlined_call_operand.vmem [shape: f32[16,8], index: 3, kind: input, shape index: {}]
  %s4 = inlined_call_operand.vmem [shape: f32[8,16], index: 4, kind: input, shape index: {}]
  %s5 = inlined_call_operand.vmem [shape: f32[288,32], index: 5, kind: input, shape index: {}]
  %s6 = inlined_call_operand.hbm [shape: f32[8,32], index: 6, kind: output, shape index: {0}]
  %s7 = inlined_call_operand.hbm [shape: f32[16,32], index: 7, kind: output, shape index: {1}]
  %8 = xla_tuple %s6, %s7
  %s9 = sld [smem:[#allocation0]]
  $region42: #{_device_forward.1} parent=0
    _
  %s11 = ssub.s32 1, %s9
  %s12 = scalar_select 0, %s11, %s9
  $region1: #{_device_forward.1} parent=0
    #allocation2 [shape = 'u8[4096]{0}', space=vmem, size = 0x1000, scoped, tag = 'output window, operand 0, single buffered']
    #allocation3 [shape = 's32[1]{0}', space=sflag, size = 0x4, scoped, tag = 'scoped memory for _device_forward.1']
    #allocation4 [shape = 'u8[8192]{0}', space=vmem, size = 0x2000, scoped, tag = 'output window, operand 1, single buffered']
    #allocation5 [shape = 's32[1]{0}', space=sflag, size = 0x4, scoped, tag = 'scoped memory for _device_forward.1']
    %13 = vsyncpa [#allocation3], 0
    %14 = vsyncpa [#allocation5], 0
    // Predicated region
    $region2: #{_device_forward.1} parent=1 // pred_check
      _
    $region3: #{_device_forward.1} parent=1 // pred_check_branch
      %16 = sbr.rel (0) target = $region5
    $region4: #{_device_forward.1} parent=1 // pred_region
      _
    $region5: #{_device_forward.1} parent=1 // pred_fallthru
      _
    // Predicated region
    $region6: #{_device_forward.1} parent=1 // pred_check
      _
    $region7: #{_device_forward.1} parent=1 // pred_check_branch
      %18 = sbr.rel (0) target = $region9
    $region8: #{_device_forward.1} parent=1 // pred_region
      _
    $region9: #{_device_forward.1} parent=1 // pred_fallthru
      _
    // Predicated region
    $region10: #{_device_forward.1} parent=1 // pred_check
      _
    $region11: #{_device_forward.1} parent=1 // pred_check_branch
      %20 = sbr.rel (0) target = $region13
    $region12: #{_device_forward.1} parent=1 // pred_region
      _
    $region13: #{_device_forward.1} parent=1 // pred_fallthru
      _
    // Predicated region
    $region14: #{_device_forward.1} parent=1 // pred_check
      _
    $region15: #{_device_forward.1} parent=1 // pred_check_branch
      %22 = sbr.rel (0) target = $region17
    $region16: #{_device_forward.1} parent=1 // pred_region
      _
    $region17: #{_device_forward.1} parent=1 // pred_fallthru
      _
    // Predicated region
    $region18: #{_device_forward.1} parent=1 // pred_check
      _
    $region19: #{_device_forward.1} parent=1 // pred_check_branch
      %24 = sbr.rel (0) target = $region21
    $region20: #{_device_forward.1} parent=1 // pred_region
      _
    $region21: #{_device_forward.1} parent=1 // pred_fallthru
      _
    // Predicated region
    $region22: #{_device_forward.1} parent=1 // pred_check
      _
    $region23: #{_device_forward.1} parent=1 // pred_check_branch
      %26 = sbr.rel (0) target = $region25
    $region24: #{_device_forward.1} parent=1 // pred_region
      _
    $region25: #{_device_forward.1} parent=1 // pred_fallthru
      _
    %v28 = vld [vmem:[%s0] sm:$0xff]
    %v29 = vld [vmem:[%s0 + $0x8] sm:$0xff]
    %v30 = vld [vmem:[%s0 + $0x10] sm:$0xff]
    %v31 = vld [vmem:[%s0 + $0x18] sm:$0xff]
    %v32 = vld [vmem:[%s0 + $0x20] sm:$0xff]
    %v33 = vld [vmem:[%s0 + $0x28] sm:$0xff]
    %v34 = vld [vmem:[%s0 + $0x30] sm:$0xff]
    %v35 = vld [vmem:[%s0 + $0x38] sm:$0xff]
    %v36 = vmul.f32 %v28, %v28
    %v37 = vmul.f32 %v29, %v29
    %v38 = vmul.f32 %v30, %v30
    %v39 = vmul.f32 %v31, %v31
    %v40 = vmul.f32 %v32, %v32
    %v41 = vmul.f32 %v33, %v33
    %v42 = vmul.f32 %v34, %v34
    %v43 = vmul.f32 %v35, %v35
    %52 = vrot.lane.b32.xlu0 %v28, 127
    %v53 = vpop.permute.xlu0 %52
    %54 = vrot.lane.b32.xlu0 %v29, 127
    %v55 = vpop.permute.xlu0 %54
    %56 = vrot.lane.b32.xlu0 %v30, 127
    %v57 = vpop.permute.xlu0 %56
    %58 = vrot.lane.b32.xlu0 %v31, 127
    %v59 = vpop.permute.xlu0 %58
    %60 = vrot.lane.b32.xlu0 %v32, 127
    %v61 = vpop.permute.xlu0 %60
    %62 = vrot.lane.b32.xlu0 %v33, 127
    %v63 = vpop.permute.xlu0 %62
    %64 = vrot.lane.b32.xlu0 %v34, 127
    %v65 = vpop.permute.xlu0 %64
    %66 = vrot.lane.b32.xlu0 %v35, 127
    %v67 = vpop.permute.xlu0 %66
    %v76 = vmul.f32 %v28, %v53
    %v77 = vmul.f32 %v29, %v55
    %v78 = vmul.f32 %v30, %v57
    %v79 = vmul.f32 %v31, %v59
    %v80 = vmul.f32 %v32, %v61
    %v81 = vmul.f32 %v33, %v63
    %v82 = vmul.f32 %v34, %v65
    %v83 = vmul.f32 %v35, %v67
    %84 = vrot.lane.b32.xlu0 %v28, 126
    %v85 = vpop.permute.xlu0 %84
    %86 = vrot.lane.b32.xlu0 %v29, 126
    %v87 = vpop.permute.xlu0 %86
    %88 = vrot.lane.b32.xlu0 %v30, 126
    %v89 = vpop.permute.xlu0 %88
    %90 = vrot.lane.b32.xlu0 %v31, 126
    %v91 = vpop.permute.xlu0 %90
    %92 = vrot.lane.b32.xlu0 %v32, 126
    %v93 = vpop.permute.xlu0 %92
    %94 = vrot.lane.b32.xlu0 %v33, 126
    %v95 = vpop.permute.xlu0 %94
    %96 = vrot.lane.b32.xlu0 %v34, 126
    %v97 = vpop.permute.xlu0 %96
    %98 = vrot.lane.b32.xlu0 %v35, 126
    %v99 = vpop.permute.xlu0 %98
    %v108 = vmul.f32 %v28, %v85
    %v109 = vmul.f32 %v29, %v87
    %v110 = vmul.f32 %v30, %v89
    %v111 = vmul.f32 %v31, %v91
    %v112 = vmul.f32 %v32, %v93
    %v113 = vmul.f32 %v33, %v95
    %v114 = vmul.f32 %v34, %v97
    %v115 = vmul.f32 %v35, %v99
    %124 = vrot.lane.b32.xlu0 %v36, 3
    %v125 = vpop.permute.xlu0 %124
    %126 = vrot.lane.b32.xlu0 %v37, 3
    %v127 = vpop.permute.xlu0 %126
    %128 = vrot.lane.b32.xlu0 %v38, 3
    %v129 = vpop.permute.xlu0 %128
    %130 = vrot.lane.b32.xlu0 %v39, 3
    %v131 = vpop.permute.xlu0 %130
    %132 = vrot.lane.b32.xlu0 %v40, 3
    %v133 = vpop.permute.xlu0 %132
    %134 = vrot.lane.b32.xlu0 %v41, 3
    %v135 = vpop.permute.xlu0 %134
    %136 = vrot.lane.b32.xlu0 %v42, 3
    %v137 = vpop.permute.xlu0 %136
    %138 = vrot.lane.b32.xlu0 %v43, 3
    %v139 = vpop.permute.xlu0 %138
    %156 = vrot.lane.b32.xlu0 %v76, 6
    %v157 = vpop.permute.xlu0 %156
    %158 = vrot.lane.b32.xlu0 %v77, 6
    %v159 = vpop.permute.xlu0 %158
    %160 = vrot.lane.b32.xlu0 %v78, 6
    %v161 = vpop.permute.xlu0 %160
    %162 = vrot.lane.b32.xlu0 %v79, 6
    %v163 = vpop.permute.xlu0 %162
    %164 = vrot.lane.b32.xlu0 %v80, 6
    %v165 = vpop.permute.xlu0 %164
    %166 = vrot.lane.b32.xlu0 %v81, 6
    %v167 = vpop.permute.xlu0 %166
    %168 = vrot.lane.b32.xlu0 %v82, 6
    %v169 = vpop.permute.xlu0 %168
    %170 = vrot.lane.b32.xlu0 %v83, 6
    %v171 = vpop.permute.xlu0 %170
    %188 = vrot.lane.b32.xlu0 %v108, 7
    %v189 = vpop.permute.xlu0 %188
    %190 = vrot.lane.b32.xlu0 %v109, 7
    %v191 = vpop.permute.xlu0 %190
    %192 = vrot.lane.b32.xlu0 %v110, 7
    %v193 = vpop.permute.xlu0 %192
    %194 = vrot.lane.b32.xlu0 %v111, 7
    %v195 = vpop.permute.xlu0 %194
    %196 = vrot.lane.b32.xlu0 %v112, 7
    %v197 = vpop.permute.xlu0 %196
    %198 = vrot.lane.b32.xlu0 %v113, 7
    %v199 = vpop.permute.xlu0 %198
    %200 = vrot.lane.b32.xlu0 %v114, 7
    %v201 = vpop.permute.xlu0 %200
    %202 = vrot.lane.b32.xlu0 %v115, 7
    %v203 = vpop.permute.xlu0 %202
    %212 = vrot.lane.b32.xlu0 %v76, 7
    %v213 = vpop.permute.xlu0 %212
    %214 = vrot.lane.b32.xlu0 %v77, 7
    %v215 = vpop.permute.xlu0 %214
    %216 = vrot.lane.b32.xlu0 %v78, 7
    %v217 = vpop.permute.xlu0 %216
    %218 = vrot.lane.b32.xlu0 %v79, 7
    %v219 = vpop.permute.xlu0 %218
    %220 = vrot.lane.b32.xlu0 %v80, 7
    %v221 = vpop.permute.xlu0 %220
    %222 = vrot.lane.b32.xlu0 %v81, 7
    %v223 = vpop.permute.xlu0 %222
    %224 = vrot.lane.b32.xlu0 %v82, 7
    %v225 = vpop.permute.xlu0 %224
    %226 = vrot.lane.b32.xlu0 %v83, 7
    %v227 = vpop.permute.xlu0 %226
    %236 = vrot.lane.b32.xlu0 %v28, 5
    %v237 = vpop.permute.xlu0 %236
    %238 = vrot.lane.b32.xlu0 %v29, 5
    %v239 = vpop.permute.xlu0 %238
    %240 = vrot.lane.b32.xlu0 %v30, 5
    %v241 = vpop.permute.xlu0 %240
    %242 = vrot.lane.b32.xlu0 %v31, 5
    %v243 = vpop.permute.xlu0 %242
    %244 = vrot.lane.b32.xlu0 %v32, 5
    %v245 = vpop.permute.xlu0 %244
    %246 = vrot.lane.b32.xlu0 %v33, 5
    %v247 = vpop.permute.xlu0 %246
    %248 = vrot.lane.b32.xlu0 %v34, 5
    %v249 = vpop.permute.xlu0 %248
    %250 = vrot.lane.b32.xlu0 %v35, 5
    %v251 = vpop.permute.xlu0 %250
    %vm260 = vcmask 23552
    %v261 = vsel %vm260, %v28, %v125
    %v262 = vsel %vm260, %v29, %v127
    %v263 = vsel %vm260, %v30, %v129
    %v264 = vsel %vm260, %v31, %v131
    %v265 = vsel %vm260, %v32, %v133
    %v266 = vsel %vm260, %v33, %v135
    %v267 = vsel %vm260, %v34, %v137
    %v268 = vsel %vm260, %v35, %v139
    %vm269 = vcmask 48128
    %v270 = vsel %vm269, %v261, %v157
    %v271 = vsel %vm269, %v262, %v159
    %v272 = vsel %vm269, %v263, %v161
    %v273 = vsel %vm269, %v264, %v163
    %v274 = vsel %vm269, %v265, %v165
    %v275 = vsel %vm269, %v266, %v167
    %v276 = vsel %vm269, %v267, %v169
    %v277 = vsel %vm269, %v268, %v171
    %vm278 = vcmask 56320
    %v279 = vsel %vm278, %v270, %v189
    %v280 = vsel %vm278, %v271, %v191
    %v281 = vsel %vm278, %v272, %v193
    %v282 = vsel %vm278, %v273, %v195
    %v283 = vsel %vm278, %v274, %v197
    %v284 = vsel %vm278, %v275, %v199
    %v285 = vsel %vm278, %v276, %v201
    %v286 = vsel %vm278, %v277, %v203
    %vm287 = vcmask 64512
    %v288 = vsel %vm287, %v279, %v213
    %v289 = vsel %vm287, %v280, %v215
    %v290 = vsel %vm287, %v281, %v217
    %v291 = vsel %vm287, %v282, %v219
    %v292 = vsel %vm287, %v283, %v221
    %v293 = vsel %vm287, %v284, %v223
    %v294 = vsel %vm287, %v285, %v225
    %v295 = vsel %vm287, %v286, %v227
    %vm296 = vcmask 72704
    %v297 = vsel %vm296, %v288, %v237
    %v298 = vsel %vm296, %v289, %v239
    %v299 = vsel %vm296, %v290, %v241
    %v300 = vsel %vm296, %v291, %v243
    %v301 = vsel %vm296, %v292, %v245
    %v302 = vsel %vm296, %v293, %v247
    %v303 = vsel %vm296, %v294, %v249
    %v304 = vsel %vm296, %v295, %v251
    %vm305 = vcmask 80896
    %v306 = vsel %vm305, %v297, 1.0
    %v307 = vsel %vm305, %v298, 1.0
    %v308 = vsel %vm305, %v299, 1.0
    %v309 = vsel %vm305, %v300, 1.0
    %v310 = vsel %vm305, %v301, 1.0
    %v311 = vsel %vm305, %v302, 1.0
    %v312 = vsel %vm305, %v303, 1.0
    %v313 = vsel %vm305, %v304, 1.0
    %v314 = vld [vmem:[%s1] sm:$0xff]
    %vm315 = vcmask 523264
    %v317 = vsel %vm315, %v314, 0
    %319 = vmatpush.msra.mxu0 0.0
    %320 = vmatpush.msra.mxu0 0.0
    %321 = vmatpush.msra.mxu0 0.0
    %322 = vmatpush.msra.mxu0 0.0
    %323 = vmatpush.msra.mxu0 0.0
    %324 = vmatpush.msra.mxu0 0.0
    %325 = vmatpush.msra.mxu0 0.0
    %326 = vmatpush.msra.mxu0 0.0
    %327 = vmatpush.msra.mxu0 %v313
    %328 = vmatpush.msra.mxu0 %v312
    %329 = vmatpush.msra.mxu0 %v311
    %330 = vmatpush.msra.mxu0 %v310
    %331 = vmatpush.msra.mxu0 %v309
    %332 = vmatpush.msra.mxu0 %v308
    %333 = vmatpush.msra.mxu0 %v307
    %334 = vmatpush.msra.mxu0 %v306
    %335 = vmatmul.f32.gmra.mxu0 %v317
    %v336 = vpop.f32.mrf.mxu0
    %v337 = vadd.f32 0.0, %v336
    %338 = vdwg.mxu0
    %v339 = vmax.f32 %v337, 1.0
    %v340 = vrcp.pop %v339
    %v341 = vmul.f32 %v339, %v340
    %v342 = vsub.f32 1.0, %v341
    %v343 = vmul.f32 %v340, %v342
    %v344 = vadd.f32 %v340, %v343
    %vm345 = vweird.f32 %v339
    %vm346 = vweird.f32 %v340
    %vm347 = vmor %vm345, %vm346
    %v348 = vsel %vm347, %v340, %v344
    %v349 = vand.u32 2147483647, %v339
    %vm350 = vcmp.eq.f32.partialorder %v349, 8.507059e+37
    %v351 = vand.u32 %v339, 2147483648
    %v352 = vor.u32 1.1754944e-38, %v351
    %v353 = vsel %vm350, %v352, %v348
    %v354 = vmul.f32 1.0, %v353
    %356 = vset.pattern.permute.xlu0 10
    %357 = vperm.xlu0 %356, %v354
    %v358 = vpop.permute.xlu0 %357
    %v360 = vmul.f32 %v337, %v358
    %v361 = vmul.f32 %v360, %v360
    %363 = vrot.lane.b32.xlu0 %v361, 3
    %v364 = vpop.permute.xlu0 %363
    %v366 = vsub.f32 %v360, %v364
    %368 = vrot.lane.b32.xlu0 %v360, 127
    %v369 = vpop.permute.xlu0 %368
    %v371 = vmul.f32 %v360, %v369
    %372 = vrot.lane.b32.xlu0 %v360, 126
    %v373 = vpop.permute.xlu0 %372
    %v375 = vmul.f32 %v360, %v373
    %377 = vrot.lane.b32.xlu0 %v375, 1
    %v378 = vpop.permute.xlu0 %377
    %381 = vrot.lane.b32.xlu0 %v371, 1
    %v382 = vpop.permute.xlu0 %381
    %vm384 = vcmask 7168
    %v385 = vsel %vm384, %v371, %v378
    %vm386 = vcmask 15360
    %v387 = vsel %vm386, %v385, %v382
    %389 = vrot.lane.b32.xlu0 %v387, 6
    %v390 = vpop.permute.xlu0 %389
    %v392 = vsub.f32 %v360, %v390
    %393 = vrot.lane.b32.xlu0 %v354, 127
    %v394 = vpop.permute.xlu0 %393
    %v396 = vmul.f32 %v337, %v394
    %398 = vrot.lane.b32.xlu0 %v366, 125
    %v399 = vpop.permute.xlu0 %398
    %v401 = vsel %vm260, %v399, 0.0
    %402 = vadd.xlane.f32.xlu0 %v401
    %v403 = vpop.xlane.xlu0 %402
    %v404 = vmax.f32 %v403, 0.0
    %v405 = vrsqrt.pop %v404
    %v406 = vmul.f32 %v405, %v404
    %v407 = vmul.f32 %v406, %v405
    %v408 = vmul.f32 0.5, %v407
    %v409 = vsub.f32 1.5, %v408
    %v410 = vmul.f32 %v405, %v409
    %v411 = vmul.f32 %v404, %v410
    %vm412 = vcmp.eq.f32.partialorder %v404, inf
    %v413 = vsel %vm412, %v404, %v411
    %vm414 = vcmp.eq.f32.partialorder %v404, 0.0
    %v415 = vand.u32 %v404, 2147483648
    %v416 = vsel %vm414, %v415, %v413
    %418 = vrot.lane.b32.xlu0 %v339, 127
    %v419 = vpop.permute.xlu0 %418
    %422 = vrot.lane.b32.xlu0 %v337, 1
    %v423 = vpop.permute.xlu0 %422
    %426 = vrot.lane.b32.xlu0 %v396, 2
    %v427 = vpop.permute.xlu0 %426
    %v429 = vsel %vm260, %v360, %v366
    %v430 = vsel %vm269, %v429, %v392
    %v431 = vsel %vm296, %v430, %v419
    %v432 = vsel %vm305, %v431, %v423
    %vm433 = vcmask 89088
    %v434 = vsel %vm433, %v432, %v427
    %vm435 = vcmask 97280
    %v436 = vsel %vm435, %v434, %v416
    %vm437 = vcmask 105472
    %v438 = vsel %vm437, %v436, 0.0
    %v439 = vld [vmem:[%s2] sm:$0xff]
    %v440 = vld [vmem:[%s2 + $0x8] sm:$0xff]
    %v442 = vsel %vm287, %v439, 0
    %v445 = vsel %vm287, %v440, 0
    %447 = vmatpush.msra.mxu0 0.0
    %448 = vmatpush.msra.mxu0 0.0
    %449 = vmatpush.msra.mxu0 0.0
    %450 = vmatpush.msra.mxu0 0.0
    %451 = vmatpush.msra.mxu0 0.0
    %452 = vmatpush.msra.mxu0 0.0
    %453 = vmatpush.msra.mxu0 0.0
    %454 = vmatpush.msra.mxu0 0.0
    %455 = vmatpush.msra.mxu0 0.0
    %456 = vmatpush.msra.mxu0 0.0
    %457 = vmatpush.msra.mxu0 0.0
    %458 = vmatpush.msra.mxu0 0.0
    %459 = vmatpush.msra.mxu0 0.0
    %460 = vmatpush.msra.mxu0 0.0
    %461 = vmatpush.msra.mxu0 0.0
    %462 = vmatpush.msra.mxu0 %v438
    %463 = vmatmul.f32.gmra.mxu0 %v442
    %v464 = vpop.f32.mrf.mxu0
    %v465 = vadd.f32 0.0, %v464
    %466 = vmatmul.f32.gmra.mxu0 %v445
    %v467 = vpop.f32.mrf.mxu0
    %v468 = vadd.f32 0.0, %v467
    %469 = vdwg.mxu0
    %v470 = vld [vmem:[%s3] sm:$0xff]
    %v471 = vld [vmem:[%s3 + $0x8] sm:$0xff]
    %v473 = vsel %vm287, %v470, 0
    %v476 = vsel %vm287, %v471, 0
    %478 = vmatpush.msra.mxu0 0.0
    %479 = vmatpush.msra.mxu0 0.0
    %480 = vmatpush.msra.mxu0 0.0
    %481 = vmatpush.msra.mxu0 0.0
    %482 = vmatpush.msra.mxu0 0.0
    %483 = vmatpush.msra.mxu0 0.0
    %484 = vmatpush.msra.mxu0 0.0
    %485 = vmatpush.msra.mxu0 0.0
    %486 = vmatpush.msra.mxu0 0.0
    %487 = vmatpush.msra.mxu0 0.0
    %488 = vmatpush.msra.mxu0 0.0
    %489 = vmatpush.msra.mxu0 0.0
    %490 = vmatpush.msra.mxu0 0.0
    %491 = vmatpush.msra.mxu0 0.0
    %492 = vmatpush.msra.mxu0 0.0
    %493 = vmatpush.msra.mxu0 %v438
    %494 = vmatmul.f32.gmra.mxu0 %v473
    %v495 = vpop.f32.mrf.mxu0
    %v496 = vadd.f32 0.0, %v495
    %497 = vmatmul.f32.gmra.mxu0 %v476
    %v498 = vpop.f32.mrf.mxu0
    %v499 = vadd.f32 0.0, %v498
    %500 = vdwg.mxu0
    %v501 = vsub.f32 %v496, %v465
    %v502 = vsub.f32 %v499, %v468
    %v503 = vmul.f32 %v501, %v501
    %v504 = vmul.f32 %v502, %v502
    %v505 = vsel %vm260, %v503, 0.0
    %506 = vadd.xlane.f32.xlu0 %v505
    %v507 = vpop.xlane.xlu0 %506
    %v508 = vsel %vm260, %v504, 0.0
    %509 = vadd.xlane.f32.xlu0 %v508
    %v510 = vpop.xlane.xlu0 %509
    %v511 = vrsqrt.pop %v507
    %v512 = vmul.f32 %v511, %v507
    %v513 = vmul.f32 %v512, %v511
    %v514 = vmul.f32 0.5, %v513
    %v515 = vsub.f32 1.5, %v514
    %v516 = vmul.f32 %v511, %v515
    %v517 = vmul.f32 %v507, %v516
    %vm518 = vcmp.eq.f32.partialorder %v507, inf
    %v519 = vsel %vm518, %v507, %v517
    %vm520 = vcmp.eq.f32.partialorder %v507, 0.0
    %v521 = vand.u32 %v507, 2147483648
    %v522 = vsel %vm520, %v521, %v519
    %v523 = vrsqrt.pop %v510
    %v524 = vmul.f32 %v523, %v510
    %v525 = vmul.f32 %v524, %v523
    %v526 = vmul.f32 0.5, %v525
    %v527 = vsub.f32 1.5, %v526
    %v528 = vmul.f32 %v523, %v527
    %v529 = vmul.f32 %v510, %v528
    %vm530 = vcmp.eq.f32.partialorder %v510, inf
    %v531 = vsel %vm530, %v510, %v529
    %vm532 = vcmp.eq.f32.partialorder %v510, 0.0
    %v533 = vand.u32 %v510, 2147483648
    %v534 = vsel %vm532, %v533, %v531
    %536 = vset.pattern.permute.xlu0 0
    %537 = vperm.xlu0 %536, %v501
    %v538 = vpop.permute.xlu0 %537
    %541 = vset.pattern.permute.xlu0 0
    %542 = vperm.xlu0 %541, %v502
    %v543 = vpop.permute.xlu0 %542
    %v545 = vmul.f32 %v538, %v501
    %v546 = vmul.f32 %v543, %v502
    %547 = vset.pattern.permute.xlu0 1
    %548 = vperm.xlu0 %547, %v501
    %v549 = vpop.permute.xlu0 %548
    %551 = vset.pattern.permute.xlu0 1
    %552 = vperm.xlu0 %551, %v502
    %v553 = vpop.permute.xlu0 %552
    %v555 = vmul.f32 %v549, %v501
    %v556 = vmul.f32 %v553, %v502
    %557 = vset.pattern.permute.xlu0 2
    %558 = vperm.xlu0 %557, %v501
    %v559 = vpop.permute.xlu0 %558
    %561 = vset.pattern.permute.xlu0 2
    %562 = vperm.xlu0 %561, %v502
    %v563 = vpop.permute.xlu0 %562
    %v565 = vmul.f32 %v559, %v501
    %v566 = vmul.f32 %v563, %v502
    %569 = vrot.lane.b32.xlu0 %v555, 3
    %v570 = vpop.permute.xlu0 %569
    %571 = vrot.lane.b32.xlu0 %v556, 3
    %v572 = vpop.permute.xlu0 %571
    %577 = vrot.lane.b32.xlu0 %v565, 6
    %v578 = vpop.permute.xlu0 %577
    %579 = vrot.lane.b32.xlu0 %v566, 6
    %v580 = vpop.permute.xlu0 %579
    %v583 = vsel %vm260, %v545, %v570
    %v584 = vsel %vm260, %v546, %v572
    %v585 = vsel %vm269, %v583, %v578
    %v586 = vsel %vm269, %v584, %v580
    %589 = vrot.lane.b32.xlu0 %v496, 3
    %v590 = vpop.permute.xlu0 %589
    %591 = vrot.lane.b32.xlu0 %v499, 3
    %v592 = vpop.permute.xlu0 %591
    %595 = vrot.lane.b32.xlu0 %v501, 6
    %v596 = vpop.permute.xlu0 %595
    %597 = vrot.lane.b32.xlu0 %v502, 6
    %v598 = vpop.permute.xlu0 %597
    %603 = vrot.lane.b32.xlu0 %v585, 10
    %v604 = vpop.permute.xlu0 %603
    %605 = vrot.lane.b32.xlu0 %v586, 10
    %v606 = vpop.permute.xlu0 %605
    %v609 = vsel %vm260, %v465, %v590
    %v610 = vsel %vm260, %v468, %v592
    %v611 = vsel %vm269, %v609, %v596
    %v612 = vsel %vm269, %v610, %v598
    %v613 = vsel %vm296, %v611, %v522
    %v614 = vsel %vm296, %v612, %v534
    %v615 = vsel %vm305, %v613, %v604
    %v616 = vsel %vm305, %v614, %v606
    %vm617 = vcmask 154624
    %v618 = vsel %vm617, %v615, 0.0
    %v619 = vsel %vm617, %v616, 0.0
    %620 = vrot.lane.b32.xlu0 %v496, 16
    %v621 = vpop.permute.xlu0 %620
    %622 = vrot.lane.b32.xlu0 %v499, 16
    %v623 = vpop.permute.xlu0 %622
    %628 = vrot.lane.b32.xlu0 %v618, 32
    %v629 = vpop.permute.xlu0 %628
    %630 = vrot.lane.b32.xlu0 %v619, 32
    %v631 = vpop.permute.xlu0 %630
    %vm634 = vcmask 130048
    %v635 = vsel %vm634, %v465, %v621
    %v636 = vsel %vm634, %v468, %v623
    %vm637 = vcmask 261120
    %v638 = vsel %vm637, %v635, %v629
    %v639 = vsel %vm637, %v636, %v631
    %v640 = vld [vmem:[%s5] sm:$0xff]
    %v641 = vld [vmem:[%s5 + $0x8] sm:$0xff]
    %v642 = vld [vmem:[%s5 + $0x10] sm:$0xff]
    %v643 = vld [vmem:[%s5 + $0x18] sm:$0xff]
    %v644 = vld [vmem:[%s5 + $0x20] sm:$0xff]
    %v645 = vld [vmem:[%s5 + $0x28] sm:$0xff]
    %v646 = vld [vmem:[%s5 + $0x30] sm:$0xff]
    %v647 = vld [vmem:[%s5 + $0x38] sm:$0xff]
    %v648 = vpack.c.bf16 %v639, %v638
    %v649 = vpack.c.bf16 %v641, %v640
    %v650 = vpack.c.bf16 %v643, %v642
    %v651 = vpack.c.bf16 %v645, %v644
    %v652 = vpack.c.bf16 %v647, %v646
    %v653 = vld [vmem:[%s5 + $0x40] sm:$0x1]
    %v654 = vperm.slane %v653, 0
    %v656 = vsel %vm315, %v648, 0
    %658 = vmatpush.bf16.msra.mxu0 0
    %659 = vmatpush.bf16.msra.mxu0 0
    %660 = vmatpush.bf16.msra.mxu0 0
    %661 = vmatpush.bf16.msra.mxu0 0
    %662 = vmatpush.bf16.msra.mxu0 %v652
    %663 = vmatpush.bf16.msra.mxu0 %v651
    %664 = vmatpush.bf16.msra.mxu0 %v650
    %665 = vmatpush.bf16.msra.mxu0 %v649
    %666 = vmatmul.bf16.gmra.mxu0 %v656
    %v667 = vpop.f32.mrf.mxu0
    %v668 = vadd.f32 %v654, %v667
    %v669 = vpop.f32.mrf.mxu0
    %v670 = vadd.f32 %v654, %v669
    %671 = vdwg.mxu0
    %v672 = vmax.f32 %v668, 0.0
    %v673 = vmax.f32 %v670, 0.0
    %v674 = vld [vmem:[%s5 + $0x48] sm:$0xff]
    %v675 = vld [vmem:[%s5 + $0x50] sm:$0xff]
    %v676 = vld [vmem:[%s5 + $0x58] sm:$0xff]
    %v677 = vld [vmem:[%s5 + $0x60] sm:$0xff]
    %v678 = vpack.c.bf16 %v673, %v672
    %v679 = vpack.c.bf16 %v675, %v674
    %v680 = vpack.c.bf16 %v677, %v676
    %v681 = vld [vmem:[%s5 + $0x68] sm:$0x1]
    %v682 = vperm.slane %v681, 0
    %v684 = vsel %vm637, %v678, 0
    %686 = vmatpush.bf16.msra.mxu0 0
    %687 = vmatpush.bf16.msra.mxu0 0
    %688 = vmatpush.bf16.msra.mxu0 0
    %689 = vmatpush.bf16.msra.mxu0 0
    %690 = vmatpush.bf16.msra.mxu0 0
    %691 = vmatpush.bf16.msra.mxu0 0
    %692 = vmatpush.bf16.msra.mxu0 %v680
    %693 = vmatpush.bf16.msra.mxu0 %v679
    %694 = vmatmul.bf16.gmra.mxu0 %v684
    %v695 = vpop.f32.mrf.mxu0
    %v696 = vadd.f32 %v682, %v695
    %v697 = vpop.f32.mrf.mxu0
    %v698 = vadd.f32 %v682, %v697
    %699 = vdwg.mxu0
    %v700 = vmax.f32 %v696, 0.0
    %v701 = vmax.f32 %v698, 0.0
    %v702 = vld [vmem:[%s5 + $0x70] sm:$0xff]
    %v703 = vld [vmem:[%s5 + $0x78] sm:$0xff]
    %v704 = vld [vmem:[%s5 + $0x80] sm:$0xff]
    %v705 = vld [vmem:[%s5 + $0x88] sm:$0xff]
    %v706 = vpack.c.bf16 %v701, %v700
    %v707 = vpack.c.bf16 %v703, %v702
    %v708 = vpack.c.bf16 %v705, %v704
    %v709 = vld [vmem:[%s5 + $0x90] sm:$0x1]
    %v710 = vperm.slane %v709, 0
    %v712 = vsel %vm637, %v706, 0
    %714 = vmatpush.bf16.msra.mxu0 0
    %715 = vmatpush.bf16.msra.mxu0 0
    %716 = vmatpush.bf16.msra.mxu0 0
    %717 = vmatpush.bf16.msra.mxu0 0
    %718 = vmatpush.bf16.msra.mxu0 0
    %719 = vmatpush.bf16.msra.mxu0 0
    %720 = vmatpush.bf16.msra.mxu0 %v708
    %721 = vmatpush.bf16.msra.mxu0 %v707
    %722 = vmatmul.bf16.gmra.mxu0 %v712
    %v723 = vpop.f32.mrf.mxu0
    %v724 = vadd.f32 %v710, %v723
    %v725 = vpop.f32.mrf.mxu0
    %v726 = vadd.f32 %v710, %v725
    %727 = vdwg.mxu0
    %728 = vst.msk [vmem:[#allocation4] sm:$0xff] %vm637, %v724
    %729 = vst.msk [vmem:[#allocation4 + $0x8] sm:$0xff] %vm637, %v726
    %v730 = vld [vmem:[%s4] sm:$0xff]
    %v732 = vsel %vm634, %v730, 0
    %734 = vmatpush.msra.mxu0 0.0
    %735 = vmatpush.msra.mxu0 0.0
    %736 = vmatpush.msra.mxu0 0.0
    %737 = vmatpush.msra.mxu0 0.0
    %738 = vmatpush.msra.mxu0 0.0
    %739 = vmatpush.msra.mxu0 0.0
    %740 = vmatpush.msra.mxu0 0.0
    %741 = vmatpush.msra.mxu0 0.0
    %742 = vmatpush.msra.mxu0 0.0
    %743 = vmatpush.msra.mxu0 0.0
    %744 = vmatpush.msra.mxu0 0.0
    %745 = vmatpush.msra.mxu0 0.0
    %746 = vmatpush.msra.mxu0 0.0
    %747 = vmatpush.msra.mxu0 0.0
    %748 = vmatpush.msra.mxu0 %v701
    %749 = vmatpush.msra.mxu0 %v700
    %750 = vmatmul.f32.gmra.mxu0 %v732
    %v751 = vpop.f32.mrf.mxu0
    %v752 = vadd.f32 0.0, %v751
    %753 = vdwg.mxu0
    %755 = vrot.lane.b32.xlu0 %v752, 16
    %v756 = vpop.permute.xlu0 %755
    %v758 = vsel %vm634, %v438, %v756
    %v759 = vld [vmem:[%s5 + $0x98] sm:$0xff]
    %v760 = vld [vmem:[%s5 + $0xa0] sm:$0xff]
    %v761 = vld [vmem:[%s5 + $0xa8] sm:$0xff]
    %v762 = vld [vmem:[%s5 + $0xb0] sm:$0xff]
    %v763 = vld [vmem:[%s5 + $0xb8] sm:$0xff]
    %v764 = vld [vmem:[%s5 + $0xc0] sm:$0xff]
    %v765 = vpack.c.bf16 %v758, %v758
    %v766 = vpack.c.bf16 %v760, %v759
    %v767 = vpack.c.bf16 %v762, %v761
    %v768 = vpack.c.bf16 %v764, %v763
    %v769 = vld [vmem:[%s5 + $0xc8] sm:$0x1]
    %v770 = vperm.slane %v769, 0
    %vm771 = vcmask 392192
    %v773 = vsel %vm771, %v765, 0
    %775 = vmatpush.bf16.msra.mxu0 0
    %776 = vmatpush.bf16.msra.mxu0 0
    %777 = vmatpush.bf16.msra.mxu0 0
    %778 = vmatpush.bf16.msra.mxu0 0
    %779 = vmatpush.bf16.msra.mxu0 0
    %780 = vmatpush.bf16.msra.mxu0 %v768
    %781 = vmatpush.bf16.msra.mxu0 %v767
    %782 = vmatpush.bf16.msra.mxu0 %v766
    %783 = vmatmul.bf16.gmra.mxu0 %v773
    %v784 = vpop.f32.mrf.mxu0
    %v785 = vadd.f32 %v770, %v784
    %v786 = vpop.f32.mrf.mxu0
    %787 = vdwg.mxu0
    %v788 = vmax.f32 %v785, 0.0
    %v789 = vld [vmem:[%s5 + $0xd0] sm:$0xff]
    %v790 = vld [vmem:[%s5 + $0xd8] sm:$0xff]
    %v791 = vld [vmem:[%s5 + $0xe0] sm:$0xff]
    %v792 = vld [vmem:[%s5 + $0xe8] sm:$0xff]
    %v793 = vpack.c.bf16 %v788, %v788
    %v794 = vpack.c.bf16 %v790, %v789
    %v795 = vpack.c.bf16 %v792, %v791
    %v796 = vld [vmem:[%s5 + $0xf0] sm:$0x1]
    %v797 = vperm.slane %v796, 0
    %v799 = vsel %vm637, %v793, 0
    %801 = vmatpush.bf16.msra.mxu0 0
    %802 = vmatpush.bf16.msra.mxu0 0
    %803 = vmatpush.bf16.msra.mxu0 0
    %804 = vmatpush.bf16.msra.mxu0 0
    %805 = vmatpush.bf16.msra.mxu0 0
    %806 = vmatpush.bf16.msra.mxu0 0
    %807 = vmatpush.bf16.msra.mxu0 %v795
    %808 = vmatpush.bf16.msra.mxu0 %v794
    %809 = vmatmul.bf16.gmra.mxu0 %v799
    %v810 = vpop.f32.mrf.mxu0
    %v811 = vadd.f32 %v797, %v810
    %v812 = vpop.f32.mrf.mxu0
    %813 = vdwg.mxu0
    %v814 = vmax.f32 %v811, 0.0
    %v815 = vld [vmem:[%s5 + $0xf8] sm:$0xff]
    %v816 = vld [vmem:[%s5 + $0x100] sm:$0xff]
    %v817 = vld [vmem:[%s5 + $0x108] sm:$0xff]
    %v818 = vld [vmem:[%s5 + $0x110] sm:$0xff]
    %v819 = vpack.c.bf16 %v814, %v814
    %v820 = vpack.c.bf16 %v816, %v815
    %v821 = vpack.c.bf16 %v818, %v817
    %v822 = vld [vmem:[%s5 + $0x118] sm:$0x1]
    %v823 = vperm.slane %v822, 0
    %v825 = vsel %vm637, %v819, 0
    %827 = vmatpush.bf16.msra.mxu0 0
    %828 = vmatpush.bf16.msra.mxu0 0
    %829 = vmatpush.bf16.msra.mxu0 0
    %830 = vmatpush.bf16.msra.mxu0 0
    %831 = vmatpush.bf16.msra.mxu0 0
    %832 = vmatpush.bf16.msra.mxu0 0
    %833 = vmatpush.bf16.msra.mxu0 %v821
    %834 = vmatpush.bf16.msra.mxu0 %v820
    %835 = vmatmul.bf16.gmra.mxu0 %v825
    %v836 = vpop.f32.mrf.mxu0
    %v837 = vadd.f32 %v823, %v836
    %v838 = vpop.f32.mrf.mxu0
    %839 = vdwg.mxu0
    %840 = vst.msk [vmem:[#allocation2] sm:$0xff] %vm637, %v837
    // Predicated region
    $region26: #{_device_forward.1} parent=1 // pred_check
      _
    $region27: #{_device_forward.1} parent=1 // pred_check_branch
      %842 = sbr.rel (0) target = $region29
    $region28: #{_device_forward.1} parent=1 // pred_region
      %844 = vsyncadd [#allocation3], 0
      %s846 = sshll.u32 [#allocation2], 4
      %s847 = int_to_ptr.vmem [resolvable:$true] %s846
      %s848 = sshll.u32 %s6, 4
      %s849 = int_to_ptr.hbm [resolvable:$true] %s848
      %851 = dma.vmem_to_hbm [thread:$0]  %s847, 128, %s849, [#allocation3]
    $region29: #{_device_forward.1} parent=1 // pred_fallthru
      _
    // Predicated region
    $region30: #{_device_forward.1} parent=1 // pred_check
      _
    $region31: #{_device_forward.1} parent=1 // pred_check_branch
      %853 = sbr.rel (0) target = $region33
    $region32: #{_device_forward.1} parent=1 // pred_region
      %855 = vsyncadd [#allocation5], 0
      %s856 = sshll.u32 [#allocation4], 4
      %s857 = int_to_ptr.vmem [resolvable:$true] %s856
      %s858 = sshll.u32 %s7, 4
      %s859 = int_to_ptr.hbm [resolvable:$true] %s858
      %864 = dma.vmem_to_hbm [thread:$0]  %s857, 256, %s859, [#allocation5], 128, 128, 8
    $region33: #{_device_forward.1} parent=1 // pred_fallthru
      _
    // Predicated region
    $region34: #{_device_forward.1} parent=1 // pred_check
      _
    $region35: #{_device_forward.1} parent=1 // pred_check_branch
      %866 = sbr.rel (0) target = $region37
    $region36: #{_device_forward.1} parent=1 // pred_region
      %868 = dma.done [#allocation3], 128
    $region37: #{_device_forward.1} parent=1 // pred_fallthru
      _
    // Predicated region
    $region38: #{_device_forward.1} parent=1 // pred_check
      _
    $region39: #{_device_forward.1} parent=1 // pred_check_branch
      %870 = sbr.rel (0) target = $region41
    $region40: #{_device_forward.1} parent=1 // pred_region
      %872 = dma.done [#allocation5], 256
    $region41: #{_device_forward.1} parent=1 // pred_fallthru
      _
    %873 = vsyncpa [#allocation3], 1
    %874 = vsyncpa [#allocation5], 1

</llo_original>
